<compile_context>
chip_gen: v7x
topology: tpu7x:2x2x1
jax: 0.10.0
libtpu: 0.0.40
codegen_flags: <defaults>
</compile_context>

<pallas_src>
import functools
import math

import jax
import jax.numpy as jnp
from jax import lax
from jax.experimental import pallas as pl
from jax.experimental.pallas import tpu as pltpu


def _round_up(a, m):
    return (a + m - 1) // m * m


def _mlp_kernel(x_ref, g_ref, beta_ref, w1_ref, b1_ref, w2_ref, b2_ref, o_ref,
                xn_ref, acc_ref, *, use_residual, eps, compute_dtype,
                approximate_gelu):
    kh = pl.program_id(1)

    # --- once per row tile: LayerNorm (f32) cached in VMEM, zero accumulator
    @pl.when(kh == 0)
    def _():
        x = x_ref[...].astype(jnp.float32)                       # (tm, D)
        mean = jnp.mean(x, axis=-1, keepdims=True)
        centered = x - mean
        var = jnp.mean(centered * centered, axis=-1, keepdims=True)
        xn = centered * lax.rsqrt(var + eps)
        xn = xn * g_ref[...] + beta_ref[...]                     # gamma/beta: (1, D)
        xn_ref[...] = xn.astype(compute_dtype)
        acc_ref[...] = jnp.zeros_like(acc_ref)

    # --- fc1 H-tile + GELU + partial fc2 accumulate (bf16 operands, f32 acc)
    h = jnp.dot(xn_ref[...], w1_ref[...],
                preferred_element_type=jnp.float32)              # (tm, th)
    h = h + b1_ref[...]                                          # b1 tile (1, th), f32
    if approximate_gelu:
        h = jax.nn.gelu(h, approximate=True)                     # EUP tanh path
    else:
        # exact erf form (matches torch.nn.GELU() default)
        h = 0.5 * h * (1.0 + lax.erf(h * (1.0 / math.sqrt(2.0))))

    acc_ref[...] += jnp.dot(h.astype(compute_dtype), w2_ref[...],
                            preferred_element_type=jnp.float32)  # (tm, D_out)

    # --- once per row tile: bias + residual + writeback
    @pl.when(kh == pl.num_programs(1) - 1)
    def _():
        y = acc_ref[...] + b2_ref[...]
        if use_residual:
            y = y + x_ref[...].astype(jnp.float32)
        o_ref[...] = y.astype(o_ref.dtype)


def mlp_pallas(x, params, *, use_residual=True, eps=1e-5,
               row_tile=256, h_tile=512,
               compute_dtype=jnp.bfloat16, approximate_gelu=False):
    """x: (batch, seq, in_dim).  params: dict of gamma, beta, w1, b1, w2, b2.

    w1: (in_dim, hidden_dim), w2: (hidden_dim, out_dim)  (torch W^T layout).
    compute_dtype: dtype of the MXU matmul operands (bf16 recommended);
                   accumulation is always f32.
    """
    B, S, D = x.shape
    H = params["w1"].shape[1]
    D_out = params["w2"].shape[1]
    if use_residual:
        assert D == D_out, "use_residual=True requires in_dim == out_dim"

    N = B * S

    # --- tile selection -----------------------------------------------------
    # row tile: multiple of 16 covers both f32 (8) and bf16 (16) sublane mins.
    tm = _round_up(min(row_tile, N), 16)
    # hidden tile: lane-dense multiple of 128, no larger than padded H.
    th = min(_round_up(h_tile, 128), _round_up(H, 128))
    n_pad = _round_up(N, tm)
    h_pad = _round_up(H, th)

    # --- operand preparation (pad rows / hidden, cast weights) ---------------
    x2d = x.reshape(N, D)
    if n_pad != N:
        x2d = jnp.pad(x2d, ((0, n_pad - N), (0, 0)))

    f32 = jnp.float32
    gamma = params["gamma"].reshape(1, D).astype(f32)
    beta = params["beta"].reshape(1, D).astype(f32)
    b1 = params["b1"].reshape(1, H).astype(f32)
    b2 = params["b2"].reshape(1, D_out).astype(f32)
    w1 = params["w1"].astype(compute_dtype)
    w2 = params["w2"].astype(compute_dtype)
    if h_pad != H:
        # zero padding is exact: GELU(0)=0 and padded W2 rows are zero.
        w1 = jnp.pad(w1, ((0, 0), (0, h_pad - H)))
        b1 = jnp.pad(b1, ((0, 0), (0, h_pad - H)))
        w2 = jnp.pad(w2, ((0, h_pad - H), (0, 0)))

    grid = (n_pad // tm, h_pad // th)

    kernel = functools.partial(
        _mlp_kernel, use_residual=use_residual, eps=eps,
        compute_dtype=compute_dtype, approximate_gelu=approximate_gelu)

    itemsize = jnp.dtype(x.dtype).itemsize
    cost = pl.CostEstimate(
        flops=int(2 * n_pad * D * h_pad + 2 * n_pad * h_pad * D_out),
        transcendentals=int(n_pad * h_pad),
        bytes_accessed=int(x2d.size * x2d.dtype.itemsize
                           + w1.size * w1.dtype.itemsize
                           + w2.size * w2.dtype.itemsize
                           + n_pad * D_out * itemsize),
    )

    out2d = pl.pallas_call(
        kernel,
        out_shape=jax.ShapeDtypeStruct((n_pad, D_out), x.dtype),
        grid_spec=pltpu.PrefetchScalarGridSpec(
            num_scalar_prefetch=0,
            grid=grid,
            in_specs=[
                pl.BlockSpec((tm, D), lambda i, kh: (i, 0)),       # x rows (reused over kh)
                pl.BlockSpec((1, D), lambda i, kh: (0, 0)),        # gamma
                pl.BlockSpec((1, D), lambda i, kh: (0, 0)),        # beta
                pl.BlockSpec((D, th), lambda i, kh: (0, kh)),      # W1 H-tile
                pl.BlockSpec((1, th), lambda i, kh: (0, kh)),      # b1 H-tile
                pl.BlockSpec((th, D_out), lambda i, kh: (kh, 0)),  # W2 H-tile
                pl.BlockSpec((1, D_out), lambda i, kh: (0, 0)),    # b2
            ],
            out_specs=pl.BlockSpec((tm, D_out), lambda i, kh: (i, 0)),
            scratch_shapes=[
                pltpu.VMEM((tm, D), compute_dtype),     # cached LayerNorm output
                pltpu.VMEM((tm, D_out), jnp.float32),   # fc2 accumulator
            ],
        ),
        compiler_params=pltpu.CompilerParams(
            dimension_semantics=("parallel", "arbitrary"),
            vmem_limit_bytes=48 * 1024 * 1024,
        ),
        cost_estimate=cost,
    )(x2d, gamma, beta, w1, b1, w2, b2)

    return out2d[:N].reshape(B, S, D_out)


def init_mlp_params(key, in_dim, hidden_dim, out_dim, dtype=jnp.float32):
    k1, k2, k3, k4 = jax.random.split(key, 4)
    # Weights stored as (in_features, out_features), i.e. torch W^T.
    w1 = jax.random.normal(k1, (in_dim, hidden_dim), dtype) * (1.0 / math.sqrt(in_dim))
    b1 = jax.random.normal(k2, (hidden_dim,), dtype) * 0.01
    w2 = jax.random.normal(k3, (hidden_dim, out_dim), dtype) * (1.0 / math.sqrt(hidden_dim))
    b2 = jax.random.normal(k4, (out_dim,), dtype) * 0.01
    gamma = jnp.ones((in_dim,), dtype)
    beta = jnp.zeros((in_dim,), dtype)
    return dict(gamma=gamma, beta=beta, w1=w1, b1=b1, w2=w2, b2=b2)


def mlp_reference(x, params, *, use_residual=True, eps=1e-5):
    """Pure-JAX f32 reference for correctness checking."""
    residual = x
    mean = jnp.mean(x, -1, keepdims=True)
    var = jnp.mean((x - mean) ** 2, -1, keepdims=True)
    xn = (x - mean) * lax.rsqrt(var + eps) * params["gamma"] + params["beta"]
    h = xn @ params["w1"] + params["b1"]
    h = 0.5 * h * (1.0 + lax.erf(h / math.sqrt(2.0)))
    y = h @ params["w2"] + params["b2"]
    if use_residual:
        y = y + residual
    return y


if __name__ == "__main__":
    key = jax.random.PRNGKey(0)
    k_x, k_p = jax.random.split(key)

    batch, seq, in_dim, hidden_dim = 2, 8, 32, 64
    out_dim = in_dim  # use_residual=True requires in_dim == out_dim

    x = jax.random.normal(k_x, (batch, seq, in_dim), jnp.float32)
    params = init_mlp_params(k_p, in_dim, hidden_dim, out_dim)

    ref = mlp_reference(x, params, use_residual=True)

    # f32 matmul path: tight check against the f32 reference.
    out_f32 = mlp_pallas(x, params, use_residual=True,
                         compute_dtype=jnp.float32)
    out_f32 = jax.block_until_ready(out_f32)
    assert out_f32.shape == (batch, seq, out_dim)
    assert jnp.allclose(out_f32, ref, atol=2e-4, rtol=2e-4), "f32 mismatch vs reference"

    # bf16 matmul path (default, MXU-friendly): loose check.
    out_bf16 = mlp_pallas(x, params, use_residual=True,
                          compute_dtype=jnp.bfloat16)
    out_bf16 = jax.block_until_ready(out_bf16)
    assert out_bf16.shape == (batch, seq, out_dim)
    assert jnp.allclose(out_bf16, ref, atol=5e-2, rtol=5e-2), "bf16 mismatch vs reference"

    print("KERNEL_OK")
</pallas_src>

<mosaic_0001>
module attributes {stable_mosaic.version = 11 : i64} {
  func.func @_mlp_kernel(%arg0: i32, %arg1: i32, %arg2: memref<16x32xf32, #tpu.memory_space<vmem>>, %arg3: memref<1x32xf32, #tpu.memory_space<vmem>>, %arg4: memref<1x32xf32, #tpu.memory_space<vmem>>, %arg5: memref<32x128xf32, #tpu.memory_space<vmem>>, %arg6: memref<1x128xf32, #tpu.memory_space<vmem>>, %arg7: memref<128x32xf32, #tpu.memory_space<vmem>>, %arg8: memref<1x32xf32, #tpu.memory_space<vmem>>, %arg9: memref<16x32xf32, #tpu.memory_space<vmem>>, %arg10: memref<16x32xf32, #tpu.memory_space<vmem>>, %arg11: memref<16x32xf32, #tpu.memory_space<vmem>>) attributes {dimension_semantics = [#tpu.dimension_semantics<parallel>, #tpu.dimension_semantics<arbitrary>], iteration_bounds = array<i64: 1, 1>, scalar_prefetch = 0 : i64, scratch_operands = 2 : i64, tpu.core_type = #tpu.core_type<tc>, window_params = [{transform_indices = @transform_0, window_bounds = array<i64: 16, 32>}, {pipeline_mode = #tpu.pipeline_mode<synchronous>, transform_indices = @transform_1, window_bounds = array<i64: 1, 32>}, {pipeline_mode = #tpu.pipeline_mode<synchronous>, transform_indices = @transform_2, window_bounds = array<i64: 1, 32>}, {transform_indices = @transform_3, window_bounds = array<i64: 32, 128>}, {transform_indices = @transform_4, window_bounds = array<i64: 1, 128>}, {transform_indices = @transform_5, window_bounds = array<i64: 128, 32>}, {pipeline_mode = #tpu.pipeline_mode<synchronous>, transform_indices = @transform_6, window_bounds = array<i64: 1, 32>}, {transform_indices = @transform_7, window_bounds = array<i64: 16, 32>}]} {
    %c0_i32 = arith.constant 0 : i32
    %0 = arith.cmpi eq, %arg1, %c0_i32 : i32
    %1 = arith.extui %0 : i1 to i32
    %c0_i32_0 = arith.constant 0 : i32
    %2 = arith.cmpi ne, %1, %c0_i32_0 : i32
    scf.if %2 {
      %c0_18 = arith.constant 0 : index
      %c0_19 = arith.constant 0 : index
      %25 = vector.load %arg2[%c0_18, %c0_19] : memref<16x32xf32, #tpu.memory_space<vmem>>, vector<16x32xf32>
      %cst_20 = arith.constant dense<0.000000e+00> : vector<16xf32>
      %26 = vector.multi_reduction <add>, %25, %cst_20 [1] : vector<16x32xf32> to vector<16xf32>
      %27 = vector.shape_cast %26 : vector<16xf32> to vector<16x1xf32>
      %cst_21 = arith.constant 3.200000e+01 : f32
      %28 = vector.broadcast %cst_21 : f32 to vector<16x1xf32>
      %29 = arith.divf %27, %28 : vector<16x1xf32>
      %30 = vector.broadcast %29 : vector<16x1xf32> to vector<16x32xf32>
      %31 = arith.subf %25, %30 : vector<16x32xf32>
      %32 = arith.mulf %31, %31 : vector<16x32xf32>
      %cst_22 = arith.constant dense<0.000000e+00> : vector<16xf32>
      %33 = vector.multi_reduction <add>, %32, %cst_22 [1] : vector<16x32xf32> to vector<16xf32>
      %34 = vector.shape_cast %33 : vector<16xf32> to vector<16x1xf32>
      %cst_23 = arith.constant 3.200000e+01 : f32
      %35 = vector.broadcast %cst_23 : f32 to vector<16x1xf32>
      %36 = arith.divf %34, %35 : vector<16x1xf32>
      %cst_24 = arith.constant 9.99999974E-6 : f32
      %37 = vector.broadcast %cst_24 : f32 to vector<16x1xf32>
      %38 = arith.addf %36, %37 : vector<16x1xf32>
      %39 = math.rsqrt %38 : vector<16x1xf32>
      %40 = vector.broadcast %39 : vector<16x1xf32> to vector<16x32xf32>
      %41 = arith.mulf %31, %40 : vector<16x32xf32>
      %c0_25 = arith.constant 0 : index
      %c0_26 = arith.constant 0 : index
      %42 = vector.load %arg3[%c0_25, %c0_26] : memref<1x32xf32, #tpu.memory_space<vmem>>, vector<1x32xf32>
      %43 = vector.broadcast %42 : vector<1x32xf32> to vector<16x32xf32>
      %44 = arith.mulf %41, %43 : vector<16x32xf32>
      %c0_27 = arith.constant 0 : index
      %c0_28 = arith.constant 0 : index
      %45 = vector.load %arg4[%c0_27, %c0_28] : memref<1x32xf32, #tpu.memory_space<vmem>>, vector<1x32xf32>
      %46 = vector.broadcast %45 : vector<1x32xf32> to vector<16x32xf32>
      %47 = arith.addf %44, %46 : vector<16x32xf32>
      %c0_29 = arith.constant 0 : index
      %c0_30 = arith.constant 0 : index
      %48 = vector.load %arg10[%c0_29, %c0_30] : memref<16x32xf32, #tpu.memory_space<vmem>>, vector<16x32xf32>
      tpu.vector_store %arg10[%c0_29, %c0_30], %47 {strides = array<i32>} : memref<16x32xf32, #tpu.memory_space<vmem>>, vector<16x32xf32>,
      %cst_31 = arith.constant 0.000000e+00 : f32
      %49 = vector.broadcast %cst_31 : f32 to vector<16x32xf32>
      %c0_32 = arith.constant 0 : index
      %c0_33 = arith.constant 0 : index
      %50 = vector.load %arg11[%c0_32, %c0_33] : memref<16x32xf32, #tpu.memory_space<vmem>>, vector<16x32xf32>
      tpu.vector_store %arg11[%c0_32, %c0_33], %49 {strides = array<i32>} : memref<16x32xf32, #tpu.memory_space<vmem>>, vector<16x32xf32>,
    } else {
    }
    %c0 = arith.constant 0 : index
    %c0_1 = arith.constant 0 : index
    %3 = vector.load %arg10[%c0, %c0_1] : memref<16x32xf32, #tpu.memory_space<vmem>>, vector<16x32xf32>
    %c0_2 = arith.constant 0 : index
    %c0_3 = arith.constant 0 : index
    %4 = vector.load %arg5[%c0_2, %c0_3] : memref<32x128xf32, #tpu.memory_space<vmem>>, vector<32x128xf32>
    %cst = arith.constant dense<0.000000e+00> : vector<16x128xf32>
    %5 = tpu.matmul %3, %4, %cst {dimension_numbers = #tpu.dot_dimension_numbers<[1], [0], [0], [1], [0, 0, 1, 1], [], []>} : vector<16x32xf32>, vector<32x128xf32>, vector<16x128xf32> -> vector<16x128xf32>
    %c0_4 = arith.constant 0 : index
    %c0_5 = arith.constant 0 : index
    %6 = vector.load %arg6[%c0_4, %c0_5] : memref<1x128xf32, #tpu.memory_space<vmem>>, vector<1x128xf32>
    %7 = vector.broadcast %6 : vector<1x128xf32> to vector<16x128xf32>
    %8 = arith.addf %5, %7 : vector<16x128xf32>
    %cst_6 = arith.constant 5.000000e-01 : f32
    %9 = vector.broadcast %cst_6 : f32 to vector<16x128xf32>
    %10 = arith.mulf %9, %8 : vector<16x128xf32>
    %cst_7 = arith.constant 0.707106769 : f32
    %11 = vector.broadcast %cst_7 : f32 to vector<16x128xf32>
    %12 = arith.mulf %8, %11 : vector<16x128xf32>
    %13 = math.erf %12 : vector<16x128xf32>
    %cst_8 = arith.constant 1.000000e+00 : f32
    %14 = vector.broadcast %cst_8 : f32 to vector<16x128xf32>
    %15 = arith.addf %14, %13 : vector<16x128xf32>
    %16 = arith.mulf %10, %15 : vector<16x128xf32>
    %c0_9 = arith.constant 0 : index
    %c0_10 = arith.constant 0 : index
    %17 = vector.load %arg11[%c0_9, %c0_10] : memref<16x32xf32, #tpu.memory_space<vmem>>, vector<16x32xf32>
    %c0_11 = arith.constant 0 : index
    %c0_12 = arith.constant 0 : index
    %18 = vector.load %arg7[%c0_11, %c0_12] : memref<128x32xf32, #tpu.memory_space<vmem>>, vector<128x32xf32>
    %cst_13 = arith.constant dense<0.000000e+00> : vector<16x32xf32>
    %19 = tpu.matmul %16, %18, %cst_13 {dimension_numbers = #tpu.dot_dimension_numbers<[1], [0], [0], [1], [0, 0, 1, 1], [], []>} : vector<16x128xf32>, vector<128x32xf32>, vector<16x32xf32> -> vector<16x32xf32>
    %20 = arith.addf %17, %19 : vector<16x32xf32>
    %c0_14 = arith.constant 0 : index
    %c0_15 = arith.constant 0 : index
    %21 = vector.load %arg11[%c0_14, %c0_15] : memref<16x32xf32, #tpu.memory_space<vmem>>, vector<16x32xf32>
    tpu.vector_store %arg11[%c0_14, %c0_15], %20 {strides = array<i32>} : memref<16x32xf32, #tpu.memory_space<vmem>>, vector<16x32xf32>,
    %c0_i32_16 = arith.constant 0 : i32
    %22 = arith.cmpi eq, %arg1, %c0_i32_16 : i32
    %23 = arith.extui %22 : i1 to i32
    %c0_i32_17 = arith.constant 0 : i32
    %24 = arith.cmpi ne, %23, %c0_i32_17 : i32
    scf.if %24 {
      %c0_18 = arith.constant 0 : index
      %c0_19 = arith.constant 0 : index
      %25 = vector.load %arg11[%c0_18, %c0_19] : memref<16x32xf32, #tpu.memory_space<vmem>>, vector<16x32xf32>
      %c0_20 = arith.constant 0 : index
      %c0_21 = arith.constant 0 : index
      %26 = vector.load %arg8[%c0_20, %c0_21] : memref<1x32xf32, #tpu.memory_space<vmem>>, vector<1x32xf32>
      %27 = vector.broadcast %26 : vector<1x32xf32> to vector<16x32xf32>
      %28 = arith.addf %25, %27 : vector<16x32xf32>
      %c0_22 = arith.constant 0 : index
      %c0_23 = arith.constant 0 : index
      %29 = vector.load %arg2[%c0_22, %c0_23] : memref<16x32xf32, #tpu.memory_space<vmem>>, vector<16x32xf32>
      %30 = arith.addf %28, %29 : vector<16x32xf32>
      %c0_24 = arith.constant 0 : index
      %c0_25 = arith.constant 0 : index
      %31 = vector.load %arg9[%c0_24, %c0_25] : memref<16x32xf32, #tpu.memory_space<vmem>>, vector<16x32xf32>
      tpu.vector_store %arg9[%c0_24, %c0_25], %30 {strides = array<i32>} : memref<16x32xf32, #tpu.memory_space<vmem>>, vector<16x32xf32>,
    } else {
    }
    return
  }
  func.func @transform_0(%arg0: i32, %arg1: i32) -> (i32, i32) {
    %c0_i32 = arith.constant 0 : i32
    %c0_i32_0 = arith.constant 0 : i32
    return %arg0, %c0_i32 : i32, i32
  }
  func.func @transform_1(%arg0: i32, %arg1: i32) -> (i32, i32) {
    %c0_i32 = arith.constant 0 : i32
    %c0_i32_0 = arith.constant 0 : i32
    %c0_i32_1 = arith.constant 0 : i32
    return %c0_i32, %c0_i32_0 : i32, i32
  }
  func.func @transform_2(%arg0: i32, %arg1: i32) -> (i32, i32) {
    %c0_i32 = arith.constant 0 : i32
    %c0_i32_0 = arith.constant 0 : i32
    %c0_i32_1 = arith.constant 0 : i32
    return %c0_i32, %c0_i32_0 : i32, i32
  }
  func.func @transform_3(%arg0: i32, %arg1: i32) -> (i32, i32) {
    %c0_i32 = arith.constant 0 : i32
    %c0_i32_0 = arith.constant 0 : i32
    return %c0_i32, %arg1 : i32, i32
  }
  func.func @transform_4(%arg0: i32, %arg1: i32) -> (i32, i32) {
    %c0_i32 = arith.constant 0 : i32
    %c0_i32_0 = arith.constant 0 : i32
    return %c0_i32, %arg1 : i32, i32
  }
  func.func @transform_5(%arg0: i32, %arg1: i32) -> (i32, i32) {
    %c0_i32 = arith.constant 0 : i32
    %c0_i32_0 = arith.constant 0 : i32
    return %arg1, %c0_i32 : i32, i32
  }
  func.func @transform_6(%arg0: i32, %arg1: i32) -> (i32, i32) {
    %c0_i32 = arith.constant 0 : i32
    %c0_i32_0 = arith.constant 0 : i32
    %c0_i32_1 = arith.constant 0 : i32
    return %c0_i32, %c0_i32_0 : i32, i32
  }
  func.func @transform_7(%arg0: i32, %arg1: i32) -> (i32, i32) {
    %c0_i32 = arith.constant 0 : i32
    %c0_i32_0 = arith.constant 0 : i32
    return %arg0, %c0_i32 : i32, i32
  }
}

</mosaic_0001>

<llo_original>
// kernel: tpu_custom_call.1
$region0: #{tpu_custom_call.1}
  #allocation0 [shape = 'u32[]', space=smem, size = 0x4, offset = 0x4, fixed_abs, tag = 'smem constant byte address 0x4 - core index']
  #allocation1 [shape = 'u32[144,128]{1,0:T(1,128)}', space=vmem, size = 0x12000, scoped, tag = 'internal scratch']
  #allocation2 [shape = 'f32[16,32]{1,0:T(8,128)}', space=vmem, size = 0x2000, scoped, tag = 'scratch operand']
  #allocation3 [shape = 'f32[16,32]{1,0:T(8,128)}', space=vmem, size = 0x2000, scoped, tag = 'scratch operand']
  %s0 = inlined_call_operand.vmem [shape: f32[16,32], index: 0, kind: input, shape index: {}]
  %s1 = inlined_call_operand.vmem [shape: f32[1,32], index: 1, kind: input, shape index: {}]
  %s2 = inlined_call_operand.vmem [shape: f32[1,32], index: 2, kind: input, shape index: {}]
  %s3 = inlined_call_operand.vmem [shape: f32[32,128], index: 3, kind: input, shape index: {}]
  %s4 = inlined_call_operand.vmem [shape: f32[1,128], index: 4, kind: input, shape index: {}]
  %s5 = inlined_call_operand.vmem [shape: f32[128,32], index: 5, kind: input, shape index: {}]
  %s6 = inlined_call_operand.vmem [shape: f32[1,32], index: 6, kind: input, shape index: {}]
  %s7 = inlined_call_operand.hbm [shape: f32[16,32], index: 7, kind: output, shape index: {}]
  %s8 = sld [smem:[#allocation0]]
  $region46: #{tpu_custom_call.1} parent=0
    _
  %s10 = ssub.s32 1, %s8
  %s11 = scalar_select 0, %s10, %s8
  $region1: #{tpu_custom_call.1} parent=0
    #allocation4 [shape = 'u8[8192]{0}', space=vmem, size = 0x2000, scoped, tag = 'output window, operand 0, single buffered']
    #allocation5 [shape = 's32[1]{0}', space=sflag, size = 0x4, scoped, tag = 'scoped memory for tpu_custom_call.1']
    %12 = vsyncpa [#allocation5], 0
    // Predicated region
    $region2: #{tpu_custom_call.1} parent=1 // pred_check
      _
    $region3: #{tpu_custom_call.1} parent=1 // pred_check_branch
      %14 = sbr.rel (0) target = $region5
    $region4: #{tpu_custom_call.1} parent=1 // pred_region
      _
    $region5: #{tpu_custom_call.1} parent=1 // pred_fallthru
      _
    // Predicated region
    $region6: #{tpu_custom_call.1} parent=1 // pred_check
      _
    $region7: #{tpu_custom_call.1} parent=1 // pred_check_branch
      %16 = sbr.rel (0) target = $region9
    $region8: #{tpu_custom_call.1} parent=1 // pred_region
      _
    $region9: #{tpu_custom_call.1} parent=1 // pred_fallthru
      _
    // Predicated region
    $region10: #{tpu_custom_call.1} parent=1 // pred_check
      _
    $region11: #{tpu_custom_call.1} parent=1 // pred_check_branch
      %18 = sbr.rel (0) target = $region13
    $region12: #{tpu_custom_call.1} parent=1 // pred_region
      _
    $region13: #{tpu_custom_call.1} parent=1 // pred_fallthru
      _
    // Predicated region
    $region14: #{tpu_custom_call.1} parent=1 // pred_check
      _
    $region15: #{tpu_custom_call.1} parent=1 // pred_check_branch
      %20 = sbr.rel (0) target = $region17
    $region16: #{tpu_custom_call.1} parent=1 // pred_region
      _
    $region17: #{tpu_custom_call.1} parent=1 // pred_fallthru
      _
    // Predicated region
    $region18: #{tpu_custom_call.1} parent=1 // pred_check
      _
    $region19: #{tpu_custom_call.1} parent=1 // pred_check_branch
      %22 = sbr.rel (0) target = $region21
    $region20: #{tpu_custom_call.1} parent=1 // pred_region
      _
    $region21: #{tpu_custom_call.1} parent=1 // pred_fallthru
      _
    // Predicated region
    $region22: #{tpu_custom_call.1} parent=1 // pred_check
      _
    $region23: #{tpu_custom_call.1} parent=1 // pred_check_branch
      %24 = sbr.rel (0) target = $region25
    $region24: #{tpu_custom_call.1} parent=1 // pred_region
      _
    $region25: #{tpu_custom_call.1} parent=1 // pred_fallthru
      _
    // Predicated region
    $region26: #{tpu_custom_call.1} parent=1 // pred_check
      _
    $region27: #{tpu_custom_call.1} parent=1 // pred_check_branch
      %26 = sbr.rel (0) target = $region29
    $region28: #{tpu_custom_call.1} parent=1 // pred_region
      _
    $region29: #{tpu_custom_call.1} parent=1 // pred_fallthru
      _
    %p27 = scmp.eq.s32.totalorder 0, 0
    // Predicated region
    $region30: #{tpu_custom_call.1} parent=1 // pred_check
      %p28 = pneg %p27
    $region31: #{tpu_custom_call.1} parent=1 // pred_check_branch
      %30 = sbr.rel (%p28) target = $region33
    $region32: #{tpu_custom_call.1} parent=1 // pred_region
      %v31 = vld [vmem:[%s0] sm:$0xff]
      %v32 = vld [vmem:[%s0 + $0x8] sm:$0xff]
      %vm33 = vcmask 261120
      %v34 = vsel %vm33, %v31, 0.0
      %35 = vadd.xlane.f32.xlu0 %v34
      %v36 = vpop.xlane.xlu0 %35
      %v37 = vsel %vm33, %v32, 0.0
      %38 = vadd.xlane.f32.xlu0 %v37
      %v39 = vpop.xlane.xlu0 %38
      %v40 = vrcp.pop 32.0
      %v41 = vmul.f32 %v36, %v40
      %v42 = vmul.f32 %v39, %v40
      %v43 = vsub.f32 %v31, %v41
      %v44 = vsub.f32 %v32, %v42
      %v45 = vmul.f32 %v43, %v43
      %v46 = vmul.f32 %v44, %v44
      %v47 = vsel %vm33, %v45, 0.0
      %48 = vadd.xlane.f32.xlu0 %v47
      %v49 = vpop.xlane.xlu0 %48
      %v50 = vsel %vm33, %v46, 0.0
      %51 = vadd.xlane.f32.xlu0 %v50
      %v52 = vpop.xlane.xlu0 %51
      %v53 = vmul.f32 %v49, %v40
      %v54 = vmul.f32 %v52, %v40
      %v55 = vadd.f32 %v53, 1e-05
      %v56 = vadd.f32 %v54, 1e-05
      %v57 = vrsqrt.pop %v55
      %v58 = vrsqrt.pop %v56
      %v59 = vmul.f32 %v43, %v57
      %v60 = vmul.f32 %v44, %v58
      %v61 = vld [vmem:[%s1] sm:$0x1]
      %v63 = vlaneseq
      %v64 = vshrl.u32 %v63, 7
      %v65 = vsub.s32 0, %v64
      %v66 = vrot.slane %v61, %v65
      %v68 = vmul.f32 %v59, %v66
      %v69 = vmul.f32 %v60, %v66
      %v70 = vld [vmem:[%s2] sm:$0x1]
      %v72 = vlaneseq
      %v73 = vshrl.u32 %v72, 7
      %v74 = vsub.s32 0, %v73
      %v75 = vrot.slane %v70, %v74
      %v77 = vadd.f32 %v68, %v75
      %v78 = vadd.f32 %v69, %v75
      %79 = vst.msk [vmem:[#allocation2] sm:$0xff] %vm33, %v77
      %80 = vst.msk [vmem:[#allocation2 + $0x8] sm:$0xff] %vm33, %v78
      %81 = vst.msk [vmem:[#allocation3] sm:$0xff] %vm33, 0.0
      %82 = vst.msk [vmem:[#allocation3 + $0x8] sm:$0xff] %vm33, 0.0
    $region33: #{tpu_custom_call.1} parent=1 // pred_fallthru
      _
    %v83 = vld [vmem:[#allocation2] sm:$0xff]
    %v84 = vld [vmem:[#allocation2 + $0x8] sm:$0xff]
    %v85 = vld [vmem:[%s3] sm:$0xff]
    %v86 = vld [vmem:[%s3 + $0x8] sm:$0xff]
    %v87 = vld [vmem:[%s3 + $0x10] sm:$0xff]
    %v88 = vld [vmem:[%s3 + $0x18] sm:$0xff]
    %v89 = vld [vmem:[%s4] sm:$0x1]
    %v91 = vlaneseq
    %v92 = vshrl.u32 %v91, 7
    %v93 = vsub.s32 0, %v92
    %v94 = vrot.slane %v89, %v93
    %vm96 = vcmask 261120
    %v98 = vsel %vm96, %v83, 0
    %v101 = vsel %vm96, %v84, 0
    %103 = vmatprep.subr.mxu0 0.0
    %104 = vmatpush1.msra.mxu0 %v85
    %105 = vmatprep.subr.mxu0 0.0
    %106 = vmatpush1.msra.mxu0 %v86
    %107 = vmatprep.subr.mxu0 0.0
    %108 = vmatpush1.msra.mxu0 %v87
    %109 = vmatprep.subr.mxu0 0.0
    %110 = vmatpush1.msra.mxu0 %v88
    %111 = vmatprep.subr.mxu0 0.0
    %112 = vmatpush1.msra.mxu0 0.0
    %113 = vmatprep.subr.mxu0 0.0
    %114 = vmatpush1.msra.mxu0 0.0
    %115 = vmatprep.subr.mxu0 0.0
    %116 = vmatpush1.msra.mxu0 0.0
    %117 = vmatprep.subr.mxu0 0.0
    %118 = vmatpush1.msra.mxu0 0.0
    %119 = vmatprep.subr.mxu0 0.0
    %120 = vmatpush1.msra.mxu0 0.0
    %121 = vmatprep.subr.mxu0 0.0
    %122 = vmatpush1.msra.mxu0 0.0
    %123 = vmatprep.subr.mxu0 0.0
    %124 = vmatpush1.msra.mxu0 0.0
    %125 = vmatprep.subr.mxu0 0.0
    %126 = vmatpush1.msra.mxu0 0.0
    %127 = vmatprep.subr.mxu0 0.0
    %128 = vmatpush1.msra.mxu0 0.0
    %129 = vmatprep.subr.mxu0 0.0
    %130 = vmatpush1.msra.mxu0 0.0
    %131 = vmatprep.subr.mxu0 0.0
    %132 = vmatpush1.msra.mxu0 0.0
    %133 = vmatprep.subr.mxu0 0.0
    %134 = vmatpush1.msra.mxu0 0.0
    %135 = vmatprep.subr.mxu0 0.0
    %136 = vmatpush1.msra.mxu0 0.0
    %137 = vmatprep.subr.mxu0 0.0
    %138 = vmatpush1.msra.mxu0 0.0
    %139 = vmatprep.subr.mxu0 0.0
    %140 = vmatpush1.msra.mxu0 0.0
    %141 = vmatprep.subr.mxu0 0.0
    %142 = vmatpush1.msra.mxu0 0.0
    %143 = vmatprep.subr.mxu0 0.0
    %144 = vmatpush1.msra.mxu0 0.0
    %145 = vmatprep.subr.mxu0 0.0
    %146 = vmatpush1.msra.mxu0 0.0
    %147 = vmatprep.subr.mxu0 0.0
    %148 = vmatpush1.msra.mxu0 0.0
    %149 = vmatprep.subr.mxu0 0.0
    %150 = vmatpush1.msra.mxu0 0.0
    %151 = vmatprep.subr.mxu0 0.0
    %152 = vmatpush1.msra.mxu0 0.0
    %153 = vmatprep.subr.mxu0 0.0
    %154 = vmatpush1.msra.mxu0 0.0
    %155 = vmatprep.subr.mxu0 0.0
    %156 = vmatpush1.msra.mxu0 0.0
    %157 = vmatprep.subr.mxu0 0.0
    %158 = vmatpush1.msra.mxu0 0.0
    %159 = vmatprep.subr.mxu0 0.0
    %160 = vmatpush1.msra.mxu0 0.0
    %161 = vmatprep.subr.mxu0 0.0
    %162 = vmatpush1.msra.mxu0 0.0
    %163 = vmatprep.subr.mxu0 0.0
    %164 = vmatpush1.msra.mxu0 0.0
    %165 = vmatprep.subr.mxu0 0.0
    %166 = vmatpush1.msra.mxu0 0.0
    %167 = vmatprep.mubr.f32.mxu0 0.0
    %168 = vmatmul.mubr.f32.gmra.mrb[0].mxu0 %v98
    %v169 = vpop.f32.mrb[0].mxu0
    %v170 = vadd.f32 %v94, %v169
    %v171 = vpop.f32.mrb[0].mxu0
    %172 = vmatprep.mubr.f32.mxu0 0.0
    %173 = vmatmul.mubr.f32.gmra.mrb[0].mxu0 %v101
    %v174 = vpop.f32.mrb[0].mxu0
    %v175 = vadd.f32 %v94, %v174
    %v176 = vpop.f32.mrb[0].mxu0
    %177 = vdwg.mxu0
    %v178 = vmul.f32 %v170, 0.5
    %v179 = vmul.f32 %v175, 0.5
    %v180 = vmul.f32 %v170, 0.70710677
    %v181 = vmul.f32 %v175, 0.70710677
    %v182 = verf.f32.pop %v180
    %v183 = verf.f32.pop %v181
    %v184 = vadd.f32 %v182, 1.0
    %v185 = vadd.f32 %v183, 1.0
    %v186 = vmul.f32 %v178, %v184
    %v187 = vmul.f32 %v179, %v185
    %v188 = vld [vmem:[#allocation3] sm:$0xff]
    %v189 = vld [vmem:[#allocation3 + $0x8] sm:$0xff]
    %v190 = vld [vmem:[%s5] sm:$0xff]
    %v191 = vld [vmem:[%s5 + $0x8] sm:$0xff]
    %v192 = vld [vmem:[%s5 + $0x10] sm:$0xff]
    %v193 = vld [vmem:[%s5 + $0x18] sm:$0xff]
    %v194 = vld [vmem:[%s5 + $0x20] sm:$0xff]
    %v195 = vld [vmem:[%s5 + $0x28] sm:$0xff]
    %v196 = vld [vmem:[%s5 + $0x30] sm:$0xff]
    %v197 = vld [vmem:[%s5 + $0x38] sm:$0xff]
    %v198 = vld [vmem:[%s5 + $0x40] sm:$0xff]
    %v199 = vld [vmem:[%s5 + $0x48] sm:$0xff]
    %v200 = vld [vmem:[%s5 + $0x50] sm:$0xff]
    %v201 = vld [vmem:[%s5 + $0x58] sm:$0xff]
    %v202 = vld [vmem:[%s5 + $0x60] sm:$0xff]
    %v203 = vld [vmem:[%s5 + $0x68] sm:$0xff]
    %v204 = vld [vmem:[%s5 + $0x70] sm:$0xff]
    %v205 = vld [vmem:[%s5 + $0x78] sm:$0xff]
    %206 = vmatprep.subr.mxu0 0.0
    %207 = vmatpush1.msra.mxu0 %v190
    %208 = vmatprep.subr.mxu0 0.0
    %209 = vmatpush1.msra.mxu0 %v191
    %210 = vmatprep.subr.mxu0 0.0
    %211 = vmatpush1.msra.mxu0 %v192
    %212 = vmatprep.subr.mxu0 0.0
    %213 = vmatpush1.msra.mxu0 %v193
    %214 = vmatprep.subr.mxu0 0.0
    %215 = vmatpush1.msra.mxu0 %v194
    %216 = vmatprep.subr.mxu0 0.0
    %217 = vmatpush1.msra.mxu0 %v195
    %218 = vmatprep.subr.mxu0 0.0
    %219 = vmatpush1.msra.mxu0 %v196
    %220 = vmatprep.subr.mxu0 0.0
    %221 = vmatpush1.msra.mxu0 %v197
    %222 = vmatprep.subr.mxu0 0.0
    %223 = vmatpush1.msra.mxu0 %v198
    %224 = vmatprep.subr.mxu0 0.0
    %225 = vmatpush1.msra.mxu0 %v199
    %226 = vmatprep.subr.mxu0 0.0
    %227 = vmatpush1.msra.mxu0 %v200
    %228 = vmatprep.subr.mxu0 0.0
    %229 = vmatpush1.msra.mxu0 %v201
    %230 = vmatprep.subr.mxu0 0.0
    %231 = vmatpush1.msra.mxu0 %v202
    %232 = vmatprep.subr.mxu0 0.0
    %233 = vmatpush1.msra.mxu0 %v203
    %234 = vmatprep.subr.mxu0 0.0
    %235 = vmatpush1.msra.mxu0 %v204
    %236 = vmatprep.subr.mxu0 0.0
    %237 = vmatpush1.msra.mxu0 %v205
    %238 = vmatprep.subr.mxu0 0.0
    %239 = vmatpush1.msra.mxu0 0.0
    %240 = vmatprep.subr.mxu0 0.0
    %241 = vmatpush1.msra.mxu0 0.0
    %242 = vmatprep.subr.mxu0 0.0
    %243 = vmatpush1.msra.mxu0 0.0
    %244 = vmatprep.subr.mxu0 0.0
    %245 = vmatpush1.msra.mxu0 0.0
    %246 = vmatprep.subr.mxu0 0.0
    %247 = vmatpush1.msra.mxu0 0.0
    %248 = vmatprep.subr.mxu0 0.0
    %249 = vmatpush1.msra.mxu0 0.0
    %250 = vmatprep.subr.mxu0 0.0
    %251 = vmatpush1.msra.mxu0 0.0
    %252 = vmatprep.subr.mxu0 0.0
    %253 = vmatpush1.msra.mxu0 0.0
    %254 = vmatprep.subr.mxu0 0.0
    %255 = vmatpush1.msra.mxu0 0.0
    %256 = vmatprep.subr.mxu0 0.0
    %257 = vmatpush1.msra.mxu0 0.0
    %258 = vmatprep.subr.mxu0 0.0
    %259 = vmatpush1.msra.mxu0 0.0
    %260 = vmatprep.subr.mxu0 0.0
    %261 = vmatpush1.msra.mxu0 0.0
    %262 = vmatprep.subr.mxu0 0.0
    %263 = vmatpush1.msra.mxu0 0.0
    %264 = vmatprep.subr.mxu0 0.0
    %265 = vmatpush1.msra.mxu0 0.0
    %266 = vmatprep.subr.mxu0 0.0
    %267 = vmatpush1.msra.mxu0 0.0
    %268 = vmatprep.subr.mxu0 0.0
    %269 = vmatpush1.msra.mxu0 0.0
    %270 = vmatprep.mubr.f32.mxu0 0.0
    %271 = vmatmul.mubr.f32.gmra.mrb[0].mxu0 %v186
    %v272 = vpop.f32.mrb[0].mxu0
    %v273 = vadd.f32 0.0, %v272
    %v274 = vpop.f32.mrb[0].mxu0
    %275 = vmatprep.mubr.f32.mxu0 0.0
    %276 = vmatmul.mubr.f32.gmra.mrb[0].mxu0 %v187
    %v277 = vpop.f32.mrb[0].mxu0
    %v278 = vadd.f32 0.0, %v277
    %v279 = vpop.f32.mrb[0].mxu0
    %280 = vdwg.mxu0
    %v281 = vadd.f32 %v188, %v273
    %v282 = vadd.f32 %v189, %v278
    %283 = vst.msk [vmem:[#allocation3] sm:$0xff] %vm96, %v281
    %284 = vst.msk [vmem:[#allocation3 + $0x8] sm:$0xff] %vm96, %v282
    // Predicated region
    $region34: #{tpu_custom_call.1} parent=1 // pred_check
      %p285 = pneg %p27
    $region35: #{tpu_custom_call.1} parent=1 // pred_check_branch
      %287 = sbr.rel (%p285) target = $region37
    $region36: #{tpu_custom_call.1} parent=1 // pred_region
      %v288 = vld [vmem:[#allocation3] sm:$0xff]
      %v289 = vld [vmem:[#allocation3 + $0x8] sm:$0xff]
      %v290 = vld [vmem:[%s6] sm:$0x1]
      %v292 = vlaneseq
      %v293 = vshrl.u32 %v292, 7
      %v294 = vsub.s32 0, %v293
      %v295 = vrot.slane %v290, %v294
      %v297 = vadd.f32 %v288, %v295
      %v298 = vadd.f32 %v289, %v295
      %v299 = vld [vmem:[%s0] sm:$0xff]
      %v300 = vld [vmem:[%s0 + $0x8] sm:$0xff]
      %v301 = vadd.f32 %v297, %v299
      %v302 = vadd.f32 %v298, %v300
      %303 = vst.msk [vmem:[#allocation4] sm:$0xff] %vm96, %v301
      %304 = vst.msk [vmem:[#allocation4 + $0x8] sm:$0xff] %vm96, %v302
    $region37: #{tpu_custom_call.1} parent=1 // pred_fallthru
      _
    // Predicated region
    $region38: #{tpu_custom_call.1} parent=1 // pred_check
      _
    $region39: #{tpu_custom_call.1} parent=1 // pred_check_branch
      %306 = sbr.rel (0) target = $region41
    $region40: #{tpu_custom_call.1} parent=1 // pred_region
      %s308 = ssub.s32 256, 256
      %309 = vsyncadd [#allocation5], %s308
      %s310 = sshll.u32 [#allocation4], 4
      %s311 = int_to_ptr.vmem [resolvable:$true] %s310
      %316 = dma.vmem_to_hbm [thread:$0]  %s311, 256, %s7, [#allocation5], 128, 128, 8
    $region41: #{tpu_custom_call.1} parent=1 // pred_fallthru
      _
    // Predicated region
    $region42: #{tpu_custom_call.1} parent=1 // pred_check
      _
    $region43: #{tpu_custom_call.1} parent=1 // pred_check_branch
      %318 = sbr.rel (0) target = $region45
    $region44: #{tpu_custom_call.1} parent=1 // pred_region
      %319 = dma.done [#allocation5], 256
    $region45: #{tpu_custom_call.1} parent=1 // pred_fallthru
      _
    %320 = vsyncpa [#allocation5], 1

</llo_original>
